<compile_context>
chip_gen: v5e
topology: v5e:2x2
jax: 0.10.0
libtpu: 0.0.40
codegen_flags: <defaults>
</compile_context>

<pallas_src>
import math

import jax
import jax.numpy as jnp
from jax.experimental import pallas as pl
from jax.experimental.pallas import tpu as pltpu

_LANE = 128
_SUBLANE = 16                            # covers bf16 (16) and f32 (8) quanta
_VMEM_TILE_BUDGET = 24 * 1024 * 1024     # per-step VMEM working set target
_MIB = 1024 * 1024


def _round_up(x, m):
    return ((x + m - 1) // m) * m


def _memory_unit_kernel(bias_ref, index_t_ref, array_ref, out_ref, att_ref):
    io = pl.program_id(1)

    # Scores + softmax computed once per batch tile, reused across the IO sweep.
    @pl.when(io == 0)
    def _():
        b = bias_ref[...]                                    # [TB, E]
        idx_t = index_t_ref[...]                             # [E,  K]
        scores = jnp.dot(b, idx_t, preferred_element_type=jnp.float32)
        m = jnp.max(scores, axis=-1, keepdims=True)
        p = jnp.exp(scores - m)
        denom = jnp.sum(p, axis=-1, keepdims=True)
        # approx reciprocal -> EUP slot; ~2^-12 relative bias (documented).
        att = p * pl.reciprocal(denom, approx=True)
        att_ref[...] = att.astype(att_ref.dtype)

    arr = array_ref[...]                                     # [K, TIO]
    out = jnp.dot(att_ref[...], arr, preferred_element_type=jnp.float32)
    out_ref[...] = out.astype(out_ref.dtype)


def make_memory_unit_forward(index, array, input_size, output_size, *,
                             tb=1024, tio=2048,
                             compute_dtype=jnp.bfloat16,
                             out_dtype=None):
    """One-time weight prep + jitted forward(bias_emb) closure.

    index: [K, E]   array: [K, input_size*output_size]
    forward(bias_emb: [B, 1, E]) -> [B, output_size, input_size]
    """
    K, E = index.shape
    K2, IO = array.shape
    assert K2 == K and IO == input_size * output_size
    if out_dtype is None:
        out_dtype = compute_dtype
    w_bytes = jnp.dtype(compute_dtype).itemsize
    o_bytes = jnp.dtype(out_dtype).itemsize

    # ---- one-time weight layout plumbing (hoisted out of the forward path) --
    index_t = jnp.asarray(index).T.astype(compute_dtype)      # [E, K]
    arr = jnp.asarray(array).astype(compute_dtype)            # [K, IO]

    def _vmem_bytes(TB, TIO):
        return (2 * TB * E * w_bytes                     # bias double-buffer
                + 2 * E * K * w_bytes                    # index^T
                + 2 * K * TIO * w_bytes                  # array slab (x2)
                + 2 * TB * TIO * o_bytes                 # output tile (x2)
                + TB * _round_up(K, _LANE) * w_bytes)    # att scratch

    # ---- tile selection: as large as the VMEM budget allows -----------------
    TIO = min(_round_up(IO, _LANE), _round_up(tio, _LANE))
    TB_max = max(_SUBLANE, _round_up(tb, _SUBLANE))
    # Shrink TIO first (re-streaming the K~10-row array slab is cheap), then TB.
    while _vmem_bytes(TB_max, TIO) > _VMEM_TILE_BUDGET and TIO > _LANE:
        TIO = max(_LANE, _round_up(TIO // 2, _LANE))
    while _vmem_bytes(TB_max, TIO) > _VMEM_TILE_BUDGET and TB_max > _SUBLANE:
        TB_max = max(_SUBLANE, _round_up(TB_max // 2, _SUBLANE))

    IO_pad = _round_up(IO, TIO)
    if IO_pad != IO:
        arr = jnp.pad(arr, ((0, 0), (0, IO_pad - IO)))
    n_io = IO_pad // TIO

    vmem_limit = int(max(32 * _MIB, _vmem_bytes(TB_max, TIO) + 8 * _MIB))

    def _forward(bias_emb):
        B = bias_emb.shape[0]
        assert bias_emb.shape[1:] == (1, E)

        TB = min(_round_up(B, _SUBLANE), TB_max)
        B_pad = _round_up(B, TB)
        n_b = B_pad // TB

        bias2d = bias_emb.reshape(B, E).astype(compute_dtype)
        if B_pad != B:
            bias2d = jnp.pad(bias2d, ((0, B_pad - B), (0, 0)))

        cost = pl.CostEstimate(
            flops=2 * B_pad * K * E + 2 * B_pad * K * IO_pad,
            transcendentals=B_pad * K,
            bytes_accessed=(B_pad * E * w_bytes            # bias read
                            + E * K * w_bytes              # index^T read
                            + n_b * K * IO_pad * w_bytes   # array per b-tile
                            + B_pad * IO_pad * o_bytes),   # output write
        )

        out2d = pl.pallas_call(
            _memory_unit_kernel,
            out_shape=jax.ShapeDtypeStruct((B_pad, IO_pad), out_dtype),
            grid_spec=pltpu.PrefetchScalarGridSpec(
                num_scalar_prefetch=0,
                # b outer ("parallel": megacore on v7x), io inner ("arbitrary":
                # the att scratch is carried across the IO sweep).
                grid=(n_b, n_io),
                in_specs=[
                    pl.BlockSpec((TB, E), lambda b, io: (b, 0)),     # bias
                    pl.BlockSpec((E, K), lambda b, io: (0, 0)),      # index^T
                    pl.BlockSpec((K, TIO), lambda b, io: (0, io)),   # array
                ],
                out_specs=pl.BlockSpec((TB, TIO), lambda b, io: (b, io)),
                scratch_shapes=[pltpu.VMEM((TB, K), compute_dtype)],
            ),
            compiler_params=pltpu.CompilerParams(
                dimension_semantics=("parallel", "arbitrary"),
                vmem_limit_bytes=vmem_limit),
            cost_estimate=cost,
        )(bias2d, index_t, arr)

        out2d = out2d[:B, :IO]
        # torch: para_new.view(-1, output_size, input_size)
        return out2d.reshape(B, output_size, input_size)

    return jax.jit(_forward)


def xavier_uniform(key, shape, dtype=jnp.float32):
    """Matches torch.nn.init.xavier_uniform_ for a 2-D tensor (gain=1)."""
    fan_out, fan_in = shape
    bound = math.sqrt(6.0 / (fan_in + fan_out))
    return jax.random.uniform(key, shape, dtype=dtype, minval=-bound, maxval=bound)


# TODO(synk): reg_loss (L2 norms of the parameters) is training-time only and
# is left to plain JAX outside the kernel.

if __name__ == "__main__":
    # Small shapes consistent with the module.
    batch = 2
    emb_size = 32
    input_size = 8
    output_size = 4
    clusters_k = 10

    key = jax.random.PRNGKey(0)
    k_arr, k_idx, k_bias = jax.random.split(key, 3)

    # Deterministic parameter init (same shapes as the PyTorch module).
    array = xavier_uniform(k_arr, (clusters_k, input_size * output_size))
    index = xavier_uniform(k_idx, (clusters_k, emb_size))
    bias_emb = jax.random.normal(k_bias, (batch, 1, emb_size), dtype=jnp.float32)

    # Pure-JAX f32 reference of the same math.
    att_ref = jax.nn.softmax(jnp.matmul(bias_emb, index.T), axis=-1)
    ref = jnp.matmul(att_ref, array).reshape(-1, output_size, input_size)

    # Default path: bf16-streamed weights/output, f32 accumulation.
    fwd_bf16 = make_memory_unit_forward(index, array, input_size, output_size)
    out = jax.block_until_ready(fwd_bf16(bias_emb))
    assert out.shape == (batch, output_size, input_size)
    assert jnp.allclose(out.astype(jnp.float32), ref, atol=2e-2, rtol=2e-2), (
        float(jnp.max(jnp.abs(out.astype(jnp.float32) - ref))))

    # f32 escape hatch (accuracy parity check; only the approx softmax
    # reciprocal differs from the reference, ~2^-12 relative).
    fwd_f32 = make_memory_unit_forward(index, array, input_size, output_size,
                                       compute_dtype=jnp.float32,
                                       out_dtype=jnp.float32)
    out32 = jax.block_until_ready(fwd_f32(bias_emb))
    assert jnp.allclose(out32, ref, atol=2e-3, rtol=2e-3), (
        float(jnp.max(jnp.abs(out32 - ref))))

    print("KERNEL_OK")
</pallas_src>

<mosaic_0001>
module attributes {stable_mosaic.version = 11 : i64} {
  func.func @_memory_unit_kernel(%arg0: i32, %arg1: i32, %arg2: memref<16x32xbf16, #tpu.memory_space<vmem>>, %arg3: memref<32x10xbf16, #tpu.memory_space<vmem>>, %arg4: memref<10x128xbf16, #tpu.memory_space<vmem>>, %arg5: memref<16x128xbf16, #tpu.memory_space<vmem>>, %arg6: memref<16x10xbf16, #tpu.memory_space<vmem>>) attributes {dimension_semantics = [#tpu.dimension_semantics<parallel>, #tpu.dimension_semantics<arbitrary>], iteration_bounds = array<i64: 1, 1>, scalar_prefetch = 0 : i64, scratch_operands = 1 : i64, tpu.core_type = #tpu.core_type<tc>, window_params = [{transform_indices = @transform_0, window_bounds = array<i64: 16, 32>}, {pipeline_mode = #tpu.pipeline_mode<synchronous>, transform_indices = @transform_1, window_bounds = array<i64: 32, 10>}, {transform_indices = @transform_2, window_bounds = array<i64: 10, 128>}, {transform_indices = @transform_3, window_bounds = array<i64: 16, 128>}]} {
    %c0_i32 = arith.constant 0 : i32
    %0 = arith.cmpi eq, %arg1, %c0_i32 : i32
    %1 = arith.extui %0 : i1 to i32
    %c0_i32_0 = arith.constant 0 : i32
    %2 = arith.cmpi ne, %1, %c0_i32_0 : i32
    scf.if %2 {
      %c0_6 = arith.constant 0 : index
      %c0_7 = arith.constant 0 : index
      %8 = vector.load %arg2[%c0_6, %c0_7] : memref<16x32xbf16, #tpu.memory_space<vmem>>, vector<16x32xbf16>
      %c0_8 = arith.constant 0 : index
      %c0_9 = arith.constant 0 : index
      %9 = vector.load %arg3[%c0_8, %c0_9] : memref<32x10xbf16, #tpu.memory_space<vmem>>, vector<32x10xbf16>
      %cst_10 = arith.constant dense<0.000000e+00> : vector<16x10xf32>
      %10 = tpu.matmul %8, %9, %cst_10 {dimension_numbers = #tpu.dot_dimension_numbers<[1], [0], [0], [1], [0, 0, 1, 1], [], []>} : vector<16x32xbf16>, vector<32x10xbf16>, vector<16x10xf32> -> vector<16x10xf32>
      %cst_11 = arith.constant dense<0xFF800000> : vector<16xf32>
      %11 = vector.multi_reduction <maximumf>, %10, %cst_11 [1] : vector<16x10xf32> to vector<16xf32>
      %12 = vector.shape_cast %11 : vector<16xf32> to vector<16x1xf32>
      %13 = vector.broadcast %12 : vector<16x1xf32> to vector<16x10xf32>
      %14 = arith.subf %10, %13 : vector<16x10xf32>
      %15 = math.exp %14 : vector<16x10xf32>
      %cst_12 = arith.constant dense<0.000000e+00> : vector<16xf32>
      %16 = vector.multi_reduction <add>, %15, %cst_12 [1] : vector<16x10xf32> to vector<16xf32>
      %17 = vector.shape_cast %16 : vector<16xf32> to vector<16x1xf32>
      %18 = tpu.reciprocal %17 {approx = true} : vector<16x1xf32> -> vector<16x1xf32>
      %19 = vector.broadcast %18 : vector<16x1xf32> to vector<16x10xf32>
      %20 = arith.mulf %15, %19 : vector<16x10xf32>
      %21 = arith.truncf %20 : vector<16x10xf32> to vector<16x10xbf16>
      %c0_13 = arith.constant 0 : index
      %c0_14 = arith.constant 0 : index
      %22 = vector.load %arg6[%c0_13, %c0_14] : memref<16x10xbf16, #tpu.memory_space<vmem>>, vector<16x10xbf16>
      tpu.vector_store %arg6[%c0_13, %c0_14], %21 {strides = array<i32>} : memref<16x10xbf16, #tpu.memory_space<vmem>>, vector<16x10xbf16>,
    } else {
    }
    %c0 = arith.constant 0 : index
    %c0_1 = arith.constant 0 : index
    %3 = vector.load %arg4[%c0, %c0_1] : memref<10x128xbf16, #tpu.memory_space<vmem>>, vector<10x128xbf16>
    %c0_2 = arith.constant 0 : index
    %c0_3 = arith.constant 0 : index
    %4 = vector.load %arg6[%c0_2, %c0_3] : memref<16x10xbf16, #tpu.memory_space<vmem>>, vector<16x10xbf16>
    %cst = arith.constant dense<0.000000e+00> : vector<16x128xf32>
    %5 = tpu.matmul %4, %3, %cst {dimension_numbers = #tpu.dot_dimension_numbers<[1], [0], [0], [1], [0, 0, 1, 1], [], []>} : vector<16x10xbf16>, vector<10x128xbf16>, vector<16x128xf32> -> vector<16x128xf32>
    %6 = arith.truncf %5 : vector<16x128xf32> to vector<16x128xbf16>
    %c0_4 = arith.constant 0 : index
    %c0_5 = arith.constant 0 : index
    %7 = vector.load %arg5[%c0_4, %c0_5] : memref<16x128xbf16, #tpu.memory_space<vmem>>, vector<16x128xbf16>
    tpu.vector_store %arg5[%c0_4, %c0_5], %6 {strides = array<i32>} : memref<16x128xbf16, #tpu.memory_space<vmem>>, vector<16x128xbf16>,
    return
  }
  func.func @transform_0(%arg0: i32, %arg1: i32) -> (i32, i32) {
    %c0_i32 = arith.constant 0 : i32
    %c0_i32_0 = arith.constant 0 : i32
    return %arg0, %c0_i32 : i32, i32
  }
  func.func @transform_1(%arg0: i32, %arg1: i32) -> (i32, i32) {
    %c0_i32 = arith.constant 0 : i32
    %c0_i32_0 = arith.constant 0 : i32
    %c0_i32_1 = arith.constant 0 : i32
    return %c0_i32, %c0_i32_0 : i32, i32
  }
  func.func @transform_2(%arg0: i32, %arg1: i32) -> (i32, i32) {
    %c0_i32 = arith.constant 0 : i32
    %c0_i32_0 = arith.constant 0 : i32
    return %c0_i32, %arg1 : i32, i32
  }
  func.func @transform_3(%arg0: i32, %arg1: i32) -> (i32, i32) {
    %c0_i32 = arith.constant 0 : i32
    return %arg0, %arg1 : i32, i32
  }
}

</mosaic_0001>

<llo_original>
// kernel: _forward.1
$region0: #{_forward.1}
  #allocation0 [shape = 'u32[]', space=smem, size = 0x4, offset = 0x4, fixed_abs, tag = 'smem constant byte address 0x4 - core index']
  #allocation1 [shape = 'u32[72,128]{1,0:T(1,128)}', space=vmem, size = 0x9000, scoped, tag = 'internal scratch']
  #allocation2 [shape = 'bf16[16,10]{1,0:T(8,128)(2,1)}', space=vmem, size = 0x1000, scoped, tag = 'scratch operand']
  %s0 = inlined_call_operand.vmem [shape: bf16[16,32], index: 0, kind: input, shape index: {}]
  %s1 = inlined_call_operand.vmem [shape: bf16[32,10], index: 1, kind: input, shape index: {}]
  %s2 = inlined_call_operand.hbm [shape: bf16[10,128], index: 2, kind: input, shape index: {}]
  %s3 = inlined_call_operand.vmem [shape: bf16[16,128], index: 3, kind: output, shape index: {}]
  %s4 = sld [smem:[#allocation0]]
  $region30: #{_forward.1} parent=0
    _
  %s6 = ssub.s32 1, %s4
  %s7 = scalar_select 0, %s6, %s4
  $region1: #{_forward.1} parent=0
    #allocation3 [shape = 'u8[4096]{0}', space=vmem, size = 0x1000, scoped, tag = 'input window, operand 2, single buffered']
    #allocation4 [shape = 's32[1]{0}', space=sflag, size = 0x4, scoped, tag = 'scoped memory for _forward.1']
    %8 = vsyncpa [#allocation4], 0
    // Predicated region
    $region2: #{_forward.1} parent=1 // pred_check
      _
    $region3: #{_forward.1} parent=1 // pred_check_branch
      %10 = sbr.rel (0) target = $region5
    $region4: #{_forward.1} parent=1 // pred_region
      _
    $region5: #{_forward.1} parent=1 // pred_fallthru
      _
    // Predicated region
    $region6: #{_forward.1} parent=1 // pred_check
      _
    $region7: #{_forward.1} parent=1 // pred_check_branch
      %12 = sbr.rel (0) target = $region9
    $region8: #{_forward.1} parent=1 // pred_region
      _
    $region9: #{_forward.1} parent=1 // pred_fallthru
      _
    // Predicated region
    $region10: #{_forward.1} parent=1 // pred_check
      _
    $region11: #{_forward.1} parent=1 // pred_check_branch
      %14 = sbr.rel (0) target = $region13
    $region12: #{_forward.1} parent=1 // pred_region
      %16 = vsyncadd [#allocation4], 0
      %s17 = sshll.u32 %s2, 4
      %s18 = int_to_ptr.hbm [resolvable:$true] %s17
      %s19 = sshll.u32 [#allocation3], 4
      %s20 = int_to_ptr.vmem [resolvable:$true] %s19
      %25 = dma.hbm_to_vmem [thread:$0]  %s18, 128, %s20, [#allocation4], 64, 64, 4
    $region13: #{_forward.1} parent=1 // pred_fallthru
      _
    // Predicated region
    $region14: #{_forward.1} parent=1 // pred_check
      _
    $region15: #{_forward.1} parent=1 // pred_check_branch
      %27 = sbr.rel (0) target = $region17
    $region16: #{_forward.1} parent=1 // pred_region
      %29 = dma.done [#allocation4], 128
    $region17: #{_forward.1} parent=1 // pred_fallthru
      _
    %p31 = scmp.eq.s32.totalorder 0, 0
    // Predicated region
    $region18: #{_forward.1} parent=1 // pred_check
      %p32 = pneg %p31
    $region19: #{_forward.1} parent=1 // pred_check_branch
      %34 = sbr.rel (%p32) target = $region21
    $region20: #{_forward.1} parent=1 // pred_region
      %v35 = vld [vmem:[%s0] sm:$0xf]
      %v36 = vld [vmem:[%s0 + $0x4] sm:$0xf]
      %v37 = vld [vmem:[%s1] sm:$0xf]
      %v38 = vld [vmem:[%s1 + $0x4] sm:$0xf]
      %v39 = vld [vmem:[%s1 + $0x8] sm:$0xf]
      %v40 = vld [vmem:[%s1 + $0xc] sm:$0xf]
      %v43 = vunpack.c.l.b16 %v35
      %v44 = vunpack.c.l.b16 %v36
      %v45 = vpack.c.b16 %v44, %v43
      %v50 = vunpack.c.l.b16 %v37
      %v51 = vunpack.c.l.b16 %v38
      %v52 = vunpack.c.l.b16 %v39
      %v53 = vunpack.c.l.b16 %v40
      %v54 = vpack.c.b16 %v51, %v50
      %v55 = vpack.c.b16 %v53, %v52
      %vm58 = vcmask 261120
      %v60 = vsel %vm58, %v45, 0
      %62 = vmatpush.bf16.msra.mxu0 0
      %63 = vmatpush.bf16.msra.mxu0 0
      %64 = vmatpush.bf16.msra.mxu0 0
      %65 = vmatpush.bf16.msra.mxu0 0
      %66 = vmatpush.bf16.msra.mxu0 0
      %67 = vmatpush.bf16.msra.mxu0 0
      %68 = vmatpush.bf16.msra.mxu0 %v55
      %69 = vmatpush.bf16.msra.mxu0 %v54
      %70 = vmatmul.bf16.gmra.mxu0 %v60
      %v71 = vpop.f32.mrf.mxu0
      %v72 = vadd.f32 0.0, %v71
      %v73 = vpop.f32.mrf.mxu0
      %v74 = vadd.f32 0.0, %v73
      %75 = vdwg.mxu0
      %vm76 = vcmask 80896
      %v77 = vsel %vm76, %v72, -inf
      %78 = vmax.xlane.f32.xlu0 %v77
      %v79 = vpop.xlane.xlu0 %78
      %v80 = vsel %vm76, %v74, -inf
      %81 = vmax.xlane.f32.xlu0 %v80
      %v82 = vpop.xlane.xlu0 %81
      %v83 = vsub.f32 %v72, %v79
      %v84 = vsub.f32 %v74, %v82
      %v85 = vmul.f32 %v83, 1.442695
      %v86 = vpow.pop %v85
      %v87 = vmul.f32 %v84, 1.442695
      %v88 = vpow.pop %v87
      %v89 = vsel %vm76, %v86, 0.0
      %90 = vadd.xlane.f32.xlu0 %v89
      %v91 = vpop.xlane.xlu0 %90
      %v92 = vsel %vm76, %v88, 0.0
      %93 = vadd.xlane.f32.xlu0 %v92
      %v94 = vpop.xlane.xlu0 %93
      %v95 = vrcp.pop %v91
      %v96 = vrcp.pop %v94
      %v97 = vmul.f32 %v86, %v95
      %v98 = vmul.f32 %v88, %v96
      %v99 = vpack.c.bf16 %v97, %v97
      %v100 = vpack.c.bf16 %v98, %v98
      %vm101 = vcmask 76800
      %102 = vst.msk [vmem:[#allocation2] sm:$0xf] %vm101, %v99
      %103 = vst.msk [vmem:[#allocation2 + $0x4] sm:$0xf] %vm101, %v100
    $region21: #{_forward.1} parent=1 // pred_fallthru
      _
    %v104 = vld [vmem:[#allocation3] sm:$0xf]
    %v105 = vld [vmem:[#allocation3 + $0x4] sm:$0x1]
    %v106 = vld [vmem:[#allocation2] sm:$0xf]
    %v107 = vld [vmem:[#allocation2 + $0x4] sm:$0xf]
    %v110 = vunpack.c.l.b16 %v106
    %v111 = vunpack.c.l.b16 %v107
    %v112 = vpack.c.b16 %v111, %v110
    %v115 = vunpack.c.l.b16 %v104
    %v116 = vunpack.c.l.b16 %v105
    %v117 = vpack.c.b16 %v116, %v115
    %vm118 = vcmask 80896
    %v120 = vsel %vm118, %v112, 0
    %vm122 = vcmask 1044480
    %v124 = vsel %vm122, %v117, 0
    %126 = vmatpush.bf16.msra.mxu0 0
    %127 = vmatpush.bf16.msra.mxu0 0
    %128 = vmatpush.bf16.msra.mxu0 0
    %129 = vmatpush.bf16.msra.mxu0 0
    %130 = vmatpush.bf16.msra.mxu0 0
    %131 = vmatpush.bf16.msra.mxu0 0
    %132 = vmatpush.bf16.msra.mxu0 0
    %133 = vmatpush.bf16.msra.mxu0 %v124
    %134 = vmatmul.bf16.gmra.mxu0 %v120
    %v135 = vpop.f32.mrf.mxu0
    %v136 = vadd.f32 0.0, %v135
    %v137 = vpop.f32.mrf.mxu0
    %v138 = vadd.f32 0.0, %v137
    %139 = vdwg.mxu0
    %v140 = vpack.c.bf16 %v136, %v136
    %v141 = vpack.c.bf16 %v138, %v138
    %142 = vst [vmem:[%s3] sm:$0xf] %v140
    %143 = vst [vmem:[%s3 + $0x4] sm:$0xf] %v141
    // Predicated region
    $region22: #{_forward.1} parent=1 // pred_check
      _
    $region23: #{_forward.1} parent=1 // pred_check_branch
      %145 = sbr.rel (0) target = $region25
    $region24: #{_forward.1} parent=1 // pred_region
      _
    $region25: #{_forward.1} parent=1 // pred_fallthru
      _
    // Predicated region
    $region26: #{_forward.1} parent=1 // pred_check
      _
    $region27: #{_forward.1} parent=1 // pred_check_branch
      %147 = sbr.rel (0) target = $region29
    $region28: #{_forward.1} parent=1 // pred_region
      _
    $region29: #{_forward.1} parent=1 // pred_fallthru
      _
    %148 = vsyncpa [#allocation4], 1

</llo_original>
